<compile_context>
chip_gen: v7x
topology: tpu7x:2x2x1
jax: 0.10.0
libtpu: 0.0.40
codegen_flags: <defaults>
</compile_context>

<pallas_src>
import functools

import jax
import jax.numpy as jnp
from jax.experimental import pallas as pl
from jax.experimental.pallas import tpu as pltpu


def _grad_kernel(x_ref, mr_ref, ml_ref, o_ref, *, W):
    # x_ref / o_ref: (TB, H*W) — TB whole flattened (batch, channel) planes.
    # mr_ref / ml_ref: (1, H*W) float masks (valid right-tap / left-tap columns).
    x = x_ref[...]
    TB, HW = x.shape

    zW = jnp.zeros((TB, W), x.dtype)
    z1 = jnp.zeros((TB, 1), x.dtype)

    # Vertical gradient: x[i+1, j] - x[i-1, j] with zero padding.
    # Each plane is a whole row of the block, so a lane shift of +-W never
    # crosses planes; the concatenated zeros supply the pad rows exactly.
    x_dn = jnp.concatenate([x[:, W:], zW], axis=1)        # x[i+1, j], 0 at i == H-1
    x_up = jnp.concatenate([zW, x[:, : HW - W]], axis=1)  # x[i-1, j], 0 at i == 0
    v = x_dn - x_up

    # Horizontal gradient: x[i, j+1] - x[i, j-1] with zero padding.
    # The +-1 lane shift wraps across row ends inside the flattened plane; the
    # precomputed column masks zero those wrapped/boundary taps.
    x_r = jnp.concatenate([x[:, 1:], z1], axis=1) * mr_ref[...]
    x_l = jnp.concatenate([z1, x[:, : HW - 1]], axis=1) * ml_ref[...]
    h = x_r - x_l

    o_ref[...] = jnp.sqrt(v * v + h * h + 1e-6).astype(o_ref.dtype)


def get_gradient_nopadding(x):
    """x: (N, C>=3, H, W) float -> (N, 3, H, W), gradient magnitude per channel 0..2."""
    N, C, H, W = x.shape
    if C < 3:
        raise ValueError("Get_gradient_nopadding reads channels 0, 1, 2")
    dtype = x.dtype
    P = N * 3
    HW = H * W

    # Flatten the first three channels of every batch into lane-dense rows.
    x3 = x[:, :3].reshape(P, HW)

    # Column-boundary masks for the horizontal taps (computed once, tiny).
    col = jnp.arange(HW, dtype=jnp.int32) % W
    mask_r = (col < (W - 1)).astype(dtype).reshape(1, HW)
    mask_l = (col > 0).astype(dtype).reshape(1, HW)

    # Pick whole planes per block targeting ~4 MiB of input per block so that
    # (in + out) x 2 pipeline buffers stays ~16 MiB — safe on v5e/v6e/v7x.
    itemsize = jnp.dtype(dtype).itemsize
    plane_bytes = HW * itemsize
    target_block_bytes = 4 * 1024 * 1024
    if P * plane_bytes <= target_block_bytes:
        tb = P  # everything in one block (block dims == full array dims)
    else:
        tb = max(8, (target_block_bytes // plane_bytes) // 8 * 8)  # multiple of 8
        tb = min(tb, P)
    grid = (pl.cdiv(P, tb),)

    out_flat = pl.pallas_call(
        functools.partial(_grad_kernel, W=W),
        out_shape=jax.ShapeDtypeStruct((P, HW), dtype),
        grid_spec=pltpu.PrefetchScalarGridSpec(
            num_scalar_prefetch=0,
            grid=grid,
            in_specs=[
                pl.BlockSpec((tb, HW), lambda i: (i, 0)),
                pl.BlockSpec((1, HW), lambda i: (0, 0)),
                pl.BlockSpec((1, HW), lambda i: (0, 0)),
            ],
            out_specs=pl.BlockSpec((tb, HW), lambda i: (i, 0)),
        ),
        compiler_params=pltpu.CompilerParams(
            dimension_semantics=("parallel",),   # independent planes; lets v7x use both TCs
            vmem_limit_bytes=48 * 1024 * 1024,   # above default scoped limit, below v7x physical
        ),
    )(x3, mask_r, mask_l)

    return out_flat.reshape(N, 3, H, W)


def _reference(x):
    """Pure-JAX reference (zero-padded shifted differences)."""
    x3 = x[:, :3]
    xp = jnp.pad(x3, ((0, 0), (0, 0), (1, 1), (1, 1)))
    v = xp[:, :, 2:, 1:-1] - xp[:, :, :-2, 1:-1]
    h = xp[:, :, 1:-1, 2:] - xp[:, :, 1:-1, :-2]
    return jnp.sqrt(v * v + h * h + 1e-6)


if __name__ == "__main__":
    key = jax.random.PRNGKey(0)
    x = jax.random.normal(key, (2, 4, 16, 16), dtype=jnp.float32)

    out = jax.block_until_ready(get_gradient_nopadding(x))
    ref = jax.block_until_ready(_reference(x))

    assert out.shape == (2, 3, 16, 16), out.shape
    assert jnp.allclose(out, ref, atol=1e-5, rtol=1e-5), float(
        jnp.max(jnp.abs(out - ref))
    )
    print("KERNEL_OK")
</pallas_src>

<mosaic_0001>
module attributes {stable_mosaic.version = 11 : i64} {
  func.func @_grad_kernel(%arg0: i32, %arg1: memref<6x256xf32, #tpu.memory_space<vmem>>, %arg2: memref<1x256xf32, #tpu.memory_space<vmem>>, %arg3: memref<1x256xf32, #tpu.memory_space<vmem>>, %arg4: memref<6x256xf32, #tpu.memory_space<vmem>>) attributes {dimension_semantics = [#tpu.dimension_semantics<parallel>], iteration_bounds = array<i64: 1>, scalar_prefetch = 0 : i64, scratch_operands = 0 : i64, tpu.core_type = #tpu.core_type<tc>, window_params = [{transform_indices = @transform_0, window_bounds = array<i64: 6, 256>}, {pipeline_mode = #tpu.pipeline_mode<synchronous>, transform_indices = @transform_1, window_bounds = array<i64: 1, 256>}, {pipeline_mode = #tpu.pipeline_mode<synchronous>, transform_indices = @transform_2, window_bounds = array<i64: 1, 256>}, {transform_indices = @transform_3, window_bounds = array<i64: 6, 256>}]} {
    %c0 = arith.constant 0 : index
    %c0_0 = arith.constant 0 : index
    %0 = vector.load %arg1[%c0, %c0_0] : memref<6x256xf32, #tpu.memory_space<vmem>>, vector<6x256xf32>
    %cst = arith.constant 0.000000e+00 : f32
    %1 = vector.broadcast %cst : f32 to vector<6x16xf32>
    %cst_1 = arith.constant 0.000000e+00 : f32
    %2 = vector.broadcast %cst_1 : f32 to vector<6x1xf32>
    %3 = vector.extract_strided_slice %0 {offsets = [0, 16], sizes = [6, 240], strides = [1, 1]} : vector<6x256xf32> to vector<6x240xf32>
    %4 = tpu.concatenate %3, %1 in 1 : vector<6x240xf32>, vector<6x16xf32> -> vector<6x256xf32>
    %5 = vector.extract_strided_slice %0 {offsets = [0, 0], sizes = [6, 240], strides = [1, 1]} : vector<6x256xf32> to vector<6x240xf32>
    %6 = tpu.concatenate %1, %5 in 1 : vector<6x16xf32>, vector<6x240xf32> -> vector<6x256xf32>
    %7 = arith.subf %4, %6 : vector<6x256xf32>
    %8 = vector.extract_strided_slice %0 {offsets = [0, 1], sizes = [6, 255], strides = [1, 1]} : vector<6x256xf32> to vector<6x255xf32>
    %9 = tpu.concatenate %8, %2 in 1 : vector<6x255xf32>, vector<6x1xf32> -> vector<6x256xf32>
    %c0_2 = arith.constant 0 : index
    %c0_3 = arith.constant 0 : index
    %10 = vector.load %arg2[%c0_2, %c0_3] : memref<1x256xf32, #tpu.memory_space<vmem>>, vector<1x256xf32>
    %11 = vector.broadcast %10 : vector<1x256xf32> to vector<6x256xf32>
    %12 = arith.mulf %9, %11 : vector<6x256xf32>
    %13 = vector.extract_strided_slice %0 {offsets = [0, 0], sizes = [6, 255], strides = [1, 1]} : vector<6x256xf32> to vector<6x255xf32>
    %14 = tpu.concatenate %2, %13 in 1 : vector<6x1xf32>, vector<6x255xf32> -> vector<6x256xf32>
    %c0_4 = arith.constant 0 : index
    %c0_5 = arith.constant 0 : index
    %15 = vector.load %arg3[%c0_4, %c0_5] : memref<1x256xf32, #tpu.memory_space<vmem>>, vector<1x256xf32>
    %16 = vector.broadcast %15 : vector<1x256xf32> to vector<6x256xf32>
    %17 = arith.mulf %14, %16 : vector<6x256xf32>
    %18 = arith.subf %12, %17 : vector<6x256xf32>
    %19 = arith.mulf %7, %7 : vector<6x256xf32>
    %20 = arith.mulf %18, %18 : vector<6x256xf32>
    %21 = arith.addf %19, %20 : vector<6x256xf32>
    %cst_6 = arith.constant 9.99999997E-7 : f32
    %22 = vector.broadcast %cst_6 : f32 to vector<6x256xf32>
    %23 = arith.addf %21, %22 : vector<6x256xf32>
    %24 = math.sqrt %23 : vector<6x256xf32>
    %c0_7 = arith.constant 0 : index
    %c0_8 = arith.constant 0 : index
    %25 = vector.load %arg4[%c0_7, %c0_8] : memref<6x256xf32, #tpu.memory_space<vmem>>, vector<6x256xf32>
    tpu.vector_store %arg4[%c0_7, %c0_8], %24 {strides = array<i32>} : memref<6x256xf32, #tpu.memory_space<vmem>>, vector<6x256xf32>,
    return
  }
  func.func @transform_0(%arg0: i32) -> (i32, i32) {
    %c0_i32 = arith.constant 0 : i32
    %c0_i32_0 = arith.constant 0 : i32
    return %arg0, %c0_i32 : i32, i32
  }
  func.func @transform_1(%arg0: i32) -> (i32, i32) {
    %c0_i32 = arith.constant 0 : i32
    %c0_i32_0 = arith.constant 0 : i32
    %c0_i32_1 = arith.constant 0 : i32
    return %c0_i32, %c0_i32_0 : i32, i32
  }
  func.func @transform_2(%arg0: i32) -> (i32, i32) {
    %c0_i32 = arith.constant 0 : i32
    %c0_i32_0 = arith.constant 0 : i32
    %c0_i32_1 = arith.constant 0 : i32
    return %c0_i32, %c0_i32_0 : i32, i32
  }
  func.func @transform_3(%arg0: i32) -> (i32, i32) {
    %c0_i32 = arith.constant 0 : i32
    %c0_i32_0 = arith.constant 0 : i32
    return %arg0, %c0_i32 : i32, i32
  }
}

</mosaic_0001>

<llo_original>
// kernel: tpu_custom_call.1
$region0: #{tpu_custom_call.1}
  #allocation0 [shape = 'u32[]', space=smem, size = 0x4, offset = 0x4, fixed_abs, tag = 'smem constant byte address 0x4 - core index']
  #allocation1 [shape = 'u32[144,128]{1,0:T(1,128)}', space=vmem, size = 0x12000, scoped, tag = 'internal scratch']
  %s0 = inlined_call_operand.hbm [shape: f32[6,256], index: 0, kind: input, shape index: {}]
  %s1 = inlined_call_operand.vmem [shape: f32[1,256], index: 1, kind: input, shape index: {}]
  %s2 = inlined_call_operand.vmem [shape: f32[1,256], index: 2, kind: input, shape index: {}]
  %s3 = inlined_call_operand.hbm [shape: f32[6,256], index: 3, kind: output, shape index: {}]
  %s4 = sld [smem:[#allocation0]]
  $region26: #{tpu_custom_call.1} parent=0
    _
  %s6 = ssub.s32 1, %s4
  %s7 = scalar_select 0, %s6, %s4
  $region1: #{tpu_custom_call.1} parent=0
    #allocation2 [shape = 'u8[8192]{0}', space=vmem, size = 0x2000, scoped, tag = 'input window, operand 0, single buffered']
    #allocation3 [shape = 's32[1]{0}', space=sflag, size = 0x4, scoped, tag = 'scoped memory for tpu_custom_call.1']
    #allocation4 [shape = 's32[1]{0}', space=sflag, size = 0x4, scoped, tag = 'scoped memory for tpu_custom_call.1']
    #allocation5 [shape = 'u8[8192]{0}', space=vmem, size = 0x2000, scoped, tag = 'output window, operand 0, single buffered']
    %8 = vsyncpa [#allocation3], 0
    %9 = vsyncpa [#allocation4], 0
    // Predicated region
    $region2: #{tpu_custom_call.1} parent=1 // pred_check
      _
    $region3: #{tpu_custom_call.1} parent=1 // pred_check_branch
      %11 = sbr.rel (0) target = $region5
    $region4: #{tpu_custom_call.1} parent=1 // pred_region
      %s13 = ssub.s32 256, 256
      %14 = vsyncadd [#allocation3], %s13
      %s16 = sshll.u32 [#allocation2], 4
      %s17 = int_to_ptr.vmem [resolvable:$true] %s16
      %19 = dma.hbm_to_vmem [thread:$0]  %s0, 256, %s17, [#allocation3]
    $region5: #{tpu_custom_call.1} parent=1 // pred_fallthru
      _
    // Predicated region
    $region6: #{tpu_custom_call.1} parent=1 // pred_check
      _
    $region7: #{tpu_custom_call.1} parent=1 // pred_check_branch
      %21 = sbr.rel (0) target = $region9
    $region8: #{tpu_custom_call.1} parent=1 // pred_region
      _
    $region9: #{tpu_custom_call.1} parent=1 // pred_fallthru
      _
    // Predicated region
    $region10: #{tpu_custom_call.1} parent=1 // pred_check
      _
    $region11: #{tpu_custom_call.1} parent=1 // pred_check_branch
      %23 = sbr.rel (0) target = $region13
    $region12: #{tpu_custom_call.1} parent=1 // pred_region
      _
    $region13: #{tpu_custom_call.1} parent=1 // pred_fallthru
      _
    // Predicated region
    $region14: #{tpu_custom_call.1} parent=1 // pred_check
      _
    $region15: #{tpu_custom_call.1} parent=1 // pred_check_branch
      %25 = sbr.rel (0) target = $region17
    $region16: #{tpu_custom_call.1} parent=1 // pred_region
      %26 = dma.done [#allocation3], 256
    $region17: #{tpu_custom_call.1} parent=1 // pred_fallthru
      _
    %v27 = vld [vmem:[#allocation2] sm:$0x3f]
    %v28 = vld [vmem:[#allocation2 + $0x8] sm:$0x3f]
    %31 = vrot.lane.b32.xlu0 %v27, 112
    %v32 = vpop.permute.xlu0 %31
    %33 = vrot.lane.b32.xlu0 %v28, 112
    %v34 = vpop.permute.xlu0 %33
    %vm35 = vcmask 916480
    %v36 = vsel %vm35, %v32, %v34
    %v39 = vsel %vm35, %v34, 0.0
    %40 = vrot.lane.b32.xlu0 %v27, 16
    %v41 = vpop.permute.xlu0 %40
    %42 = vrot.lane.b32.xlu0 %v28, 16
    %v43 = vpop.permute.xlu0 %42
    %vm44 = vcmask 130048
    %v45 = vsel %vm44, %v41, %v43
    %v48 = vsel %vm44, 0.0, %v41
    %v49 = vsub.f32 %v36, %v48
    %v50 = vsub.f32 %v39, %v45
    %51 = vrot.lane.b32.xlu0 %v27, 127
    %v52 = vpop.permute.xlu0 %51
    %53 = vrot.lane.b32.xlu0 %v28, 127
    %v54 = vpop.permute.xlu0 %53
    %vm55 = vcmask 1039360
    %v56 = vsel %vm55, %v52, %v54
    %v59 = vsel %vm55, %v54, 0.0
    %v60 = vld [vmem:[%s1] sm:$0x3]
    %v62 = vlaneseq
    %v63 = vshrl.u32 %v62, 7
    %v64 = vsub.s32 0, %v63
    %v65 = vrot.slane %v60, %v64
    %v66 = vlaneseq
    %v67 = vshrl.u32 %v66, 7
    %v68 = vsub.s32 1, %v67
    %v69 = vrot.slane %v60, %v68
    %v72 = vmul.f32 %v56, %v65
    %v73 = vmul.f32 %v59, %v69
    %74 = vrot.lane.b32.xlu0 %v27, 1
    %v75 = vpop.permute.xlu0 %74
    %76 = vrot.lane.b32.xlu0 %v28, 1
    %v77 = vpop.permute.xlu0 %76
    %vm78 = vcmask 7168
    %v79 = vsel %vm78, %v75, %v77
    %v82 = vsel %vm78, 0.0, %v75
    %v83 = vld [vmem:[%s2] sm:$0x3]
    %v85 = vlaneseq
    %v86 = vshrl.u32 %v85, 7
    %v87 = vsub.s32 0, %v86
    %v88 = vrot.slane %v83, %v87
    %v89 = vlaneseq
    %v90 = vshrl.u32 %v89, 7
    %v91 = vsub.s32 1, %v90
    %v92 = vrot.slane %v83, %v91
    %v95 = vmul.f32 %v82, %v88
    %v96 = vmul.f32 %v79, %v92
    %v97 = vsub.f32 %v72, %v95
    %v98 = vsub.f32 %v73, %v96
    %v99 = vmul.f32 %v49, %v49
    %v100 = vmul.f32 %v50, %v50
    %v101 = vmul.f32 %v97, %v97
    %v102 = vmul.f32 %v98, %v98
    %v103 = vadd.f32 %v99, %v101
    %v104 = vadd.f32 %v100, %v102
    %v105 = vadd.f32 %v103, 1e-06
    %v106 = vadd.f32 %v104, 1e-06
    %v107 = vrsqrt.pop %v105
    %v108 = vmul.f32 %v105, %v107
    %vm109 = vcmp.eq.f32.partialorder %v105, inf
    %v110 = vsel %vm109, %v105, %v108
    %vm111 = vcmp.eq.f32.partialorder %v105, 0.0
    %v112 = vand.u32 %v105, 2147483648
    %v113 = vsel %vm111, %v112, %v110
    %v114 = vrsqrt.pop %v106
    %v115 = vmul.f32 %v106, %v114
    %vm116 = vcmp.eq.f32.partialorder %v106, inf
    %v117 = vsel %vm116, %v106, %v115
    %vm118 = vcmp.eq.f32.partialorder %v106, 0.0
    %v119 = vand.u32 %v106, 2147483648
    %v120 = vsel %vm118, %v119, %v117
    %121 = vst [vmem:[#allocation5] sm:$0x3f] %v113
    %122 = vst [vmem:[#allocation5 + $0x8] sm:$0x3f] %v120
    // Predicated region
    $region18: #{tpu_custom_call.1} parent=1 // pred_check
      _
    $region19: #{tpu_custom_call.1} parent=1 // pred_check_branch
      %124 = sbr.rel (0) target = $region21
    $region20: #{tpu_custom_call.1} parent=1 // pred_region
      %s126 = ssub.s32 256, 256
      %127 = vsyncadd [#allocation4], %s126
      %s129 = sshll.u32 [#allocation5], 4
      %s130 = int_to_ptr.vmem [resolvable:$true] %s129
      %132 = dma.vmem_to_hbm [thread:$0]  %s130, 256, %s3, [#allocation4]
    $region21: #{tpu_custom_call.1} parent=1 // pred_fallthru
      _
    // Predicated region
    $region22: #{tpu_custom_call.1} parent=1 // pred_check
      _
    $region23: #{tpu_custom_call.1} parent=1 // pred_check_branch
      %134 = sbr.rel (0) target = $region25
    $region24: #{tpu_custom_call.1} parent=1 // pred_region
      %135 = dma.done [#allocation4], 256
    $region25: #{tpu_custom_call.1} parent=1 // pred_fallthru
      _
    %136 = vsyncpa [#allocation3], 1
    %137 = vsyncpa [#allocation4], 1

</llo_original>
